<compile_context>
chip_gen: v7x
topology: tpu7x:2x2x1
jax: 0.10.0
libtpu: 0.0.40
codegen_flags: <defaults>
</compile_context>

<pallas_src>
import functools

import jax
import jax.numpy as jnp
from jax.experimental import pallas as pl
from jax.experimental.pallas import tpu as pltpu


def _round_up(v, m):
    return (v + m - 1) // m * m


def _sage_kernel(a_ref, x_ref, wc_ref, bc_ref, o_ref, acc_ref):
    """One (row-tile i, contraction-tile k) step of (A_norm @ x) @ W_c + b_c."""
    k = pl.program_id(1)

    @pl.when(k == 0)
    def _():
        acc_ref[...] = jnp.zeros_like(acc_ref)

    # Dominant N^2 matmul: stream A row-tiles against x panels, accumulate f32.
    acc_ref[...] += jnp.dot(a_ref[...], x_ref[...],
                            preferred_element_type=jnp.float32)

    @pl.when(k == pl.num_programs(1) - 1)
    def _():
        # Folded-weight epilogue: agg @ (W_lin^T @ W2) + (b_lin @ W2).
        o_ref[...] = (jnp.dot(acc_ref[...], wc_ref[...],
                              preferred_element_type=jnp.float32)
                      + bc_ref[...]).astype(o_ref.dtype)


def _pick_tiles(n):
    """(n_pad, tm, tk): lane/sublane aligned, sized for the 64 MiB v7x VMEM."""
    if n <= 1024:
        n_pad = _round_up(n, 128)
        return n_pad, n_pad, n_pad          # single tile per axis, grid=(1,1)
    tm, tk = 512, 1024                      # v7x-safe; v5e/v6e could go ~2x
    return _round_up(n, tk), tm, tk


@functools.partial(jax.jit,
                   static_argnames=("num_nodes", "aggregator", "compute_dtype"))
def sage_feature_propagation(x, edge_index, w_lin, b_lin, w2, *,
                             num_nodes, aggregator=1,
                             compute_dtype=jnp.bfloat16):
    """x: [N, Cin] f32, edge_index: [2, E] int32, w_lin: [Cout, Cin],
    b_lin: [Cout], w2: [Cout, Cout]."""
    n, c_in = x.shape
    c_out = w_lin.shape[0]
    assert n == num_nodes
    if aggregator not in (1, 3):
        raise NotImplementedError(
            "only aggregator==1 (mean) and 3 (sum) are implemented")

    row, col = edge_index[0], edge_index[1]

    # Fold the degree normalization into the adjacency weights.
    if aggregator == 1:
        deg = jnp.clip(jnp.bincount(row, length=n), 1, None).astype(jnp.float32)
        edge_w = 1.0 / deg[row]
    else:  # aggregator == 3: plain sum aggregation
        edge_w = jnp.ones(row.shape, jnp.float32)

    n_pad, tm, tk = _pick_tiles(n)
    c_in_pad = _round_up(c_in, 128)
    c_out_pad = _round_up(c_out, 128)

    # Dense normalized adjacency, built in f32, streamed in compute_dtype.
    a = (jnp.zeros((n_pad, n_pad), jnp.float32)
         .at[row, col].add(edge_w)).astype(compute_dtype)

    x_p = jnp.zeros((n_pad, c_in_pad), compute_dtype)
    x_p = x_p.at[:n, :c_in].set(x.astype(compute_dtype))

    # Fold the two weight matmuls (kept in f32 — tiny operands).
    w_c = w_lin.T.astype(jnp.float32) @ w2.astype(jnp.float32)        # [Cin, Cout]
    b_c = (b_lin.astype(jnp.float32) @ w2.astype(jnp.float32)).reshape(1, c_out)
    w_c_p = jnp.zeros((c_in_pad, c_out_pad), jnp.float32).at[:c_in, :c_out].set(w_c)
    b_c_p = jnp.zeros((1, c_out_pad), jnp.float32).at[:, :c_out].set(b_c)

    grid = (n_pad // tm, n_pad // tk)

    out = pl.pallas_call(
        _sage_kernel,
        out_shape=jax.ShapeDtypeStruct((n_pad, c_out_pad), jnp.float32),
        grid_spec=pltpu.PrefetchScalarGridSpec(
            num_scalar_prefetch=0,
            grid=grid,
            in_specs=[
                pl.BlockSpec((tm, tk), lambda i, k: (i, k)),               # A_norm
                pl.BlockSpec((tk, c_in_pad), lambda i, k: (k, 0)),         # x
                pl.BlockSpec((c_in_pad, c_out_pad), lambda i, k: (0, 0)),  # W_c
                pl.BlockSpec((1, c_out_pad), lambda i, k: (0, 0)),         # b_c
            ],
            out_specs=pl.BlockSpec((tm, c_out_pad), lambda i, k: (i, 0)),
            scratch_shapes=[pltpu.VMEM((tm, c_out_pad), jnp.float32)],
        ),
        compiler_params=pltpu.CompilerParams(
            dimension_semantics=("parallel", "arbitrary"),
            vmem_limit_bytes=48 * 1024 * 1024,
        ),
    )(a, x_p, w_c_p, b_c_p)

    return out[:n, :c_out]


def _xavier_uniform(key, shape):
    fan_out, fan_in = shape
    bound = (6.0 / (fan_in + fan_out)) ** 0.5
    return jax.random.uniform(key, shape, jnp.float32, -bound, bound)


def _reference(x, edge_index, w_lin, b_lin, w2):
    """Pure-JAX f32 reproduction of the PyTorch forward (aggregator=1)."""
    row, col = edge_index[0], edge_index[1]
    n = x.shape[0]
    out = jnp.zeros_like(x).at[row].add(x[col])
    deg = jnp.clip(jnp.bincount(row, length=n), 1, None).astype(x.dtype)
    out = out / deg[:, None]
    out = out @ w_lin.T + b_lin
    return out @ w2


if __name__ == "__main__":
    key = jax.random.PRNGKey(0)
    k_x, k_e, k_wl, k_bl, k_w2 = jax.random.split(key, 5)

    N, C_IN, C_OUT, E = 16, 8, 16, 48

    x = jax.random.normal(k_x, (N, C_IN), jnp.float32)
    edge_index = jax.random.randint(k_e, (2, E), 0, N, jnp.int32)

    # Parameters (shapes from the module's __init__).
    w_lin = _xavier_uniform(k_wl, (C_OUT, C_IN))        # nn.Linear weight
    b_lin = jax.random.uniform(k_bl, (C_OUT,), jnp.float32,
                               -1.0 / (C_IN ** 0.5), 1.0 / (C_IN ** 0.5))
    w2 = _xavier_uniform(k_w2, (C_OUT, C_OUT))          # self.weight

    ref = _reference(x, edge_index, w_lin, b_lin, w2)

    # f32 path: exact PyTorch semantics, tight tolerance.
    out_f32 = sage_feature_propagation(x, edge_index, w_lin, b_lin, w2,
                                       num_nodes=N, compute_dtype=jnp.float32)
    out_f32 = jax.block_until_ready(out_f32)
    assert out_f32.shape == (N, C_OUT)
    assert jnp.allclose(out_f32, ref, atol=1e-4, rtol=1e-4), "f32 mismatch"

    # bf16 path (recommended perf config): bf16 A/x streams, f32 accumulation.
    out_bf16 = sage_feature_propagation(x, edge_index, w_lin, b_lin, w2,
                                        num_nodes=N, compute_dtype=jnp.bfloat16)
    out_bf16 = jax.block_until_ready(out_bf16)
    assert out_bf16.shape == (N, C_OUT)
    assert jnp.allclose(out_bf16, ref, atol=7e-2, rtol=5e-2), "bf16 mismatch"

    print("KERNEL_OK")
</pallas_src>

<mosaic_0001>
module attributes {stable_mosaic.version = 11 : i64} {
  func.func private @main(%arg0: i32) attributes {dimension_semantics = [#tpu.dimension_semantics<core_parallel>], iteration_bounds = array<i64: 2>, tpu.core_type = #tpu.core_type<sc_scalar_subcore>, window_params = []} {
    return
  }
}

module attributes {stable_mosaic.version = 11 : i64} {
  func.func private @main(%arg0: i32) attributes {dimension_semantics = [#tpu.dimension_semantics<core_parallel>], iteration_bounds = array<i64: 2>, tpu.core_type = #tpu.core_type<sc_scalar_subcore>, window_params = []} {
    return
  }
}

module attributes {stable_mosaic.version = 11 : i64} {
  func.func @_sage_kernel(%arg0: i32, %arg1: i32, %arg2: memref<128x128xf32, #tpu.memory_space<vmem>>, %arg3: memref<128x128xf32, #tpu.memory_space<vmem>>, %arg4: memref<128x128xf32, #tpu.memory_space<vmem>>, %arg5: memref<1x128xf32, #tpu.memory_space<vmem>>, %arg6: memref<128x128xf32, #tpu.memory_space<vmem>>, %arg7: memref<128x128xf32, #tpu.memory_space<vmem>>) attributes {dimension_semantics = [#tpu.dimension_semantics<parallel>, #tpu.dimension_semantics<arbitrary>], iteration_bounds = array<i64: 1, 1>, scalar_prefetch = 0 : i64, scratch_operands = 1 : i64, tpu.core_type = #tpu.core_type<tc>, window_params = [{transform_indices = @transform_0, window_bounds = array<i64: 128, 128>}, {transform_indices = @transform_1, window_bounds = array<i64: 128, 128>}, {pipeline_mode = #tpu.pipeline_mode<synchronous>, transform_indices = @transform_2, window_bounds = array<i64: 128, 128>}, {pipeline_mode = #tpu.pipeline_mode<synchronous>, transform_indices = @transform_3, window_bounds = array<i64: 1, 128>}, {transform_indices = @transform_4, window_bounds = array<i64: 128, 128>}]} {
    %c0_i32 = arith.constant 0 : i32
    %0 = arith.cmpi eq, %arg1, %c0_i32 : i32
    %1 = arith.extui %0 : i1 to i32
    %c0_i32_0 = arith.constant 0 : i32
    %2 = arith.cmpi ne, %1, %c0_i32_0 : i32
    scf.if %2 {
      %cst_10 = arith.constant 0.000000e+00 : f32
      %12 = vector.broadcast %cst_10 : f32 to vector<128x128xf32>
      %c0_11 = arith.constant 0 : index
      %c0_12 = arith.constant 0 : index
      %13 = vector.load %arg7[%c0_11, %c0_12] : memref<128x128xf32, #tpu.memory_space<vmem>>, vector<128x128xf32>
      tpu.vector_store %arg7[%c0_11, %c0_12], %12 {strides = array<i32>} : memref<128x128xf32, #tpu.memory_space<vmem>>, vector<128x128xf32>,
    } else {
    }
    %c0 = arith.constant 0 : index
    %c0_1 = arith.constant 0 : index
    %3 = vector.load %arg7[%c0, %c0_1] : memref<128x128xf32, #tpu.memory_space<vmem>>, vector<128x128xf32>
    %c0_2 = arith.constant 0 : index
    %c0_3 = arith.constant 0 : index
    %4 = vector.load %arg2[%c0_2, %c0_3] : memref<128x128xf32, #tpu.memory_space<vmem>>, vector<128x128xf32>
    %c0_4 = arith.constant 0 : index
    %c0_5 = arith.constant 0 : index
    %5 = vector.load %arg3[%c0_4, %c0_5] : memref<128x128xf32, #tpu.memory_space<vmem>>, vector<128x128xf32>
    %cst = arith.constant dense<0.000000e+00> : vector<128x128xf32>
    %6 = tpu.matmul %4, %5, %cst {dimension_numbers = #tpu.dot_dimension_numbers<[1], [0], [0], [1], [0, 0, 1, 1], [], []>} : vector<128x128xf32>, vector<128x128xf32>, vector<128x128xf32> -> vector<128x128xf32>
    %7 = arith.addf %3, %6 : vector<128x128xf32>
    %c0_6 = arith.constant 0 : index
    %c0_7 = arith.constant 0 : index
    %8 = vector.load %arg7[%c0_6, %c0_7] : memref<128x128xf32, #tpu.memory_space<vmem>>, vector<128x128xf32>
    tpu.vector_store %arg7[%c0_6, %c0_7], %7 {strides = array<i32>} : memref<128x128xf32, #tpu.memory_space<vmem>>, vector<128x128xf32>,
    %c0_i32_8 = arith.constant 0 : i32
    %9 = arith.cmpi eq, %arg1, %c0_i32_8 : i32
    %10 = arith.extui %9 : i1 to i32
    %c0_i32_9 = arith.constant 0 : i32
    %11 = arith.cmpi ne, %10, %c0_i32_9 : i32
    scf.if %11 {
      %c0_10 = arith.constant 0 : index
      %c0_11 = arith.constant 0 : index
      %12 = vector.load %arg7[%c0_10, %c0_11] : memref<128x128xf32, #tpu.memory_space<vmem>>, vector<128x128xf32>
      %c0_12 = arith.constant 0 : index
      %c0_13 = arith.constant 0 : index
      %13 = vector.load %arg4[%c0_12, %c0_13] : memref<128x128xf32, #tpu.memory_space<vmem>>, vector<128x128xf32>
      %cst_14 = arith.constant dense<0.000000e+00> : vector<128x128xf32>
      %14 = tpu.matmul %12, %13, %cst_14 {dimension_numbers = #tpu.dot_dimension_numbers<[1], [0], [0], [1], [0, 0, 1, 1], [], []>} : vector<128x128xf32>, vector<128x128xf32>, vector<128x128xf32> -> vector<128x128xf32>
      %c0_15 = arith.constant 0 : index
      %c0_16 = arith.constant 0 : index
      %15 = vector.load %arg5[%c0_15, %c0_16] : memref<1x128xf32, #tpu.memory_space<vmem>>, vector<1x128xf32>
      %16 = vector.broadcast %15 : vector<1x128xf32> to vector<128x128xf32>
      %17 = arith.addf %14, %16 : vector<128x128xf32>
      %c0_17 = arith.constant 0 : index
      %c0_18 = arith.constant 0 : index
      %18 = vector.load %arg6[%c0_17, %c0_18] : memref<128x128xf32, #tpu.memory_space<vmem>>, vector<128x128xf32>
      tpu.vector_store %arg6[%c0_17, %c0_18], %17 {strides = array<i32>} : memref<128x128xf32, #tpu.memory_space<vmem>>, vector<128x128xf32>,
    } else {
    }
    return
  }
  func.func @transform_0(%arg0: i32, %arg1: i32) -> (i32, i32) {
    %c0_i32 = arith.constant 0 : i32
    return %arg0, %arg1 : i32, i32
  }
  func.func @transform_1(%arg0: i32, %arg1: i32) -> (i32, i32) {
    %c0_i32 = arith.constant 0 : i32
    %c0_i32_0 = arith.constant 0 : i32
    return %arg1, %c0_i32 : i32, i32
  }
  func.func @transform_2(%arg0: i32, %arg1: i32) -> (i32, i32) {
    %c0_i32 = arith.constant 0 : i32
    %c0_i32_0 = arith.constant 0 : i32
    %c0_i32_1 = arith.constant 0 : i32
    return %c0_i32, %c0_i32_0 : i32, i32
  }
  func.func @transform_3(%arg0: i32, %arg1: i32) -> (i32, i32) {
    %c0_i32 = arith.constant 0 : i32
    %c0_i32_0 = arith.constant 0 : i32
    %c0_i32_1 = arith.constant 0 : i32
    return %c0_i32, %c0_i32_0 : i32, i32
  }
  func.func @transform_4(%arg0: i32, %arg1: i32) -> (i32, i32) {
    %c0_i32 = arith.constant 0 : i32
    %c0_i32_0 = arith.constant 0 : i32
    return %arg0, %c0_i32 : i32, i32
  }
}

</mosaic_0001>

<llo_original>
// kernel: sage_feature_propagation.1
$region0: #{sage_feature_propagation.1}
  #allocation0 [shape = 'u32[]', space=smem, size = 0x4, offset = 0x4, fixed_abs, tag = 'smem constant byte address 0x4 - core index']
  #allocation1 [shape = 'u32[144,128]{1,0:T(1,128)}', space=vmem, size = 0x12000, scoped, tag = 'internal scratch']
  #allocation2 [shape = 'f32[128,128]{1,0:T(8,128)}', space=vmem, size = 0x10000, scoped, tag = 'scratch operand']
  %s0 = inlined_call_operand.hbm [shape: f32[128,128], index: 0, kind: input, shape index: {}]
  %s1 = inlined_call_operand.vmem [shape: f32[128,128], index: 1, kind: input, shape index: {}]
  %s2 = inlined_call_operand.vmem [shape: f32[128,128], index: 2, kind: input, shape index: {}]
  %s3 = inlined_call_operand.vmem [shape: f32[1,128], index: 3, kind: input, shape index: {}]
  %s4 = inlined_call_operand.vmem [shape: f32[128,128], index: 4, kind: output, shape index: {}]
  %s5 = sld [smem:[#allocation0]]
  $region38: #{sage_feature_propagation.1} parent=0
    _
  %s7 = ssub.s32 1, %s5
  %s8 = scalar_select 0, %s7, %s5
  $region1: #{sage_feature_propagation.1} parent=0
    #allocation3 [shape = 'u8[65536]{0}', space=vmem, size = 0x10000, scoped, tag = 'input window, operand 0, single buffered']
    #allocation4 [shape = 's32[1]{0}', space=sflag, size = 0x4, scoped, tag = 'scoped memory for sage_feature_propagation.1']
    %9 = vsyncpa [#allocation4], 0
    // Predicated region
    $region2: #{sage_feature_propagation.1} parent=1 // pred_check
      _
    $region3: #{sage_feature_propagation.1} parent=1 // pred_check_branch
      %11 = sbr.rel (0) target = $region5
    $region4: #{sage_feature_propagation.1} parent=1 // pred_region
      %s13 = ssub.s32 2048, 2048
      %14 = vsyncadd [#allocation4], %s13
      %s15 = sshll.u32 [#allocation3], 4
      %s16 = int_to_ptr.vmem [resolvable:$true] %s15
      %21 = dma.hbm_to_vmem [thread:$0]  %s0, 2048, %s16, [#allocation4], 128, 128, 8
    $region5: #{sage_feature_propagation.1} parent=1 // pred_fallthru
      _
    // Predicated region
    $region6: #{sage_feature_propagation.1} parent=1 // pred_check
      _
    $region7: #{sage_feature_propagation.1} parent=1 // pred_check_branch
      %23 = sbr.rel (0) target = $region9
    $region8: #{sage_feature_propagation.1} parent=1 // pred_region
      _
    $region9: #{sage_feature_propagation.1} parent=1 // pred_fallthru
      _
    // Predicated region
    $region10: #{sage_feature_propagation.1} parent=1 // pred_check
      _
    $region11: #{sage_feature_propagation.1} parent=1 // pred_check_branch
      %25 = sbr.rel (0) target = $region13
    $region12: #{sage_feature_propagation.1} parent=1 // pred_region
      _
    $region13: #{sage_feature_propagation.1} parent=1 // pred_fallthru
      _
    // Predicated region
    $region14: #{sage_feature_propagation.1} parent=1 // pred_check
      _
    $region15: #{sage_feature_propagation.1} parent=1 // pred_check_branch
      %27 = sbr.rel (0) target = $region17
    $region16: #{sage_feature_propagation.1} parent=1 // pred_region
      _
    $region17: #{sage_feature_propagation.1} parent=1 // pred_fallthru
      _
    // Predicated region
    $region18: #{sage_feature_propagation.1} parent=1 // pred_check
      _
    $region19: #{sage_feature_propagation.1} parent=1 // pred_check_branch
      %29 = sbr.rel (0) target = $region21
    $region20: #{sage_feature_propagation.1} parent=1 // pred_region
      %30 = dma.done [#allocation4], 2048
    $region21: #{sage_feature_propagation.1} parent=1 // pred_fallthru
      _
    %p31 = scmp.eq.s32.totalorder 0, 0
    // Predicated region
    $region22: #{sage_feature_propagation.1} parent=1 // pred_check
      %p32 = pneg %p31
    $region23: #{sage_feature_propagation.1} parent=1 // pred_check_branch
      %34 = sbr.rel (%p32) target = $region25
    $region24: #{sage_feature_propagation.1} parent=1 // pred_region
      %35 = vst [vmem:[#allocation2] sm:$0xff] 0.0
      %36 = vst [vmem:[#allocation2 + $0x8] sm:$0xff] 0.0
      %37 = vst [vmem:[#allocation2 + $0x10] sm:$0xff] 0.0
      %38 = vst [vmem:[#allocation2 + $0x18] sm:$0xff] 0.0
      %39 = vst [vmem:[#allocation2 + $0x20] sm:$0xff] 0.0
      %40 = vst [vmem:[#allocation2 + $0x28] sm:$0xff] 0.0
      %41 = vst [vmem:[#allocation2 + $0x30] sm:$0xff] 0.0
      %42 = vst [vmem:[#allocation2 + $0x38] sm:$0xff] 0.0
      %43 = vst [vmem:[#allocation2 + $0x40] sm:$0xff] 0.0
      %44 = vst [vmem:[#allocation2 + $0x48] sm:$0xff] 0.0
      %45 = vst [vmem:[#allocation2 + $0x50] sm:$0xff] 0.0
      %46 = vst [vmem:[#allocation2 + $0x58] sm:$0xff] 0.0
      %47 = vst [vmem:[#allocation2 + $0x60] sm:$0xff] 0.0
      %48 = vst [vmem:[#allocation2 + $0x68] sm:$0xff] 0.0
      %49 = vst [vmem:[#allocation2 + $0x70] sm:$0xff] 0.0
      %50 = vst [vmem:[#allocation2 + $0x78] sm:$0xff] 0.0
    $region25: #{sage_feature_propagation.1} parent=1 // pred_fallthru
      _
    %v51 = vld [vmem:[#allocation2] sm:$0xff]
    %v52 = vld [vmem:[#allocation2 + $0x8] sm:$0xff]
    %v53 = vld [vmem:[#allocation2 + $0x10] sm:$0xff]
    %v54 = vld [vmem:[#allocation2 + $0x18] sm:$0xff]
    %v55 = vld [vmem:[#allocation2 + $0x20] sm:$0xff]
    %v56 = vld [vmem:[#allocation2 + $0x28] sm:$0xff]
    %v57 = vld [vmem:[#allocation2 + $0x30] sm:$0xff]
    %v58 = vld [vmem:[#allocation2 + $0x38] sm:$0xff]
    %v59 = vld [vmem:[#allocation2 + $0x40] sm:$0xff]
    %v60 = vld [vmem:[#allocation2 + $0x48] sm:$0xff]
    %v61 = vld [vmem:[#allocation2 + $0x50] sm:$0xff]
    %v62 = vld [vmem:[#allocation2 + $0x58] sm:$0xff]
    %v63 = vld [vmem:[#allocation2 + $0x60] sm:$0xff]
    %v64 = vld [vmem:[#allocation2 + $0x68] sm:$0xff]
    %v65 = vld [vmem:[#allocation2 + $0x70] sm:$0xff]
    %v66 = vld [vmem:[#allocation2 + $0x78] sm:$0xff]
    %v67 = vld [vmem:[#allocation3] sm:$0xff]
    %v68 = vld [vmem:[#allocation3 + $0x8] sm:$0xff]
    %v69 = vld [vmem:[#allocation3 + $0x10] sm:$0xff]
    %v70 = vld [vmem:[#allocation3 + $0x18] sm:$0xff]
    %v71 = vld [vmem:[#allocation3 + $0x20] sm:$0xff]
    %v72 = vld [vmem:[#allocation3 + $0x28] sm:$0xff]
    %v73 = vld [vmem:[#allocation3 + $0x30] sm:$0xff]
    %v74 = vld [vmem:[#allocation3 + $0x38] sm:$0xff]
    %v75 = vld [vmem:[#allocation3 + $0x40] sm:$0xff]
    %v76 = vld [vmem:[#allocation3 + $0x48] sm:$0xff]
    %v77 = vld [vmem:[#allocation3 + $0x50] sm:$0xff]
    %v78 = vld [vmem:[#allocation3 + $0x58] sm:$0xff]
    %v79 = vld [vmem:[#allocation3 + $0x60] sm:$0xff]
    %v80 = vld [vmem:[#allocation3 + $0x68] sm:$0xff]
    %v81 = vld [vmem:[#allocation3 + $0x70] sm:$0xff]
    %v82 = vld [vmem:[#allocation3 + $0x78] sm:$0xff]
    %v83 = vld [vmem:[%s1] sm:$0xff]
    %v84 = vld [vmem:[%s1 + $0x8] sm:$0xff]
    %v85 = vld [vmem:[%s1 + $0x10] sm:$0xff]
    %v86 = vld [vmem:[%s1 + $0x18] sm:$0xff]
    %v87 = vld [vmem:[%s1 + $0x20] sm:$0xff]
    %v88 = vld [vmem:[%s1 + $0x28] sm:$0xff]
    %v89 = vld [vmem:[%s1 + $0x30] sm:$0xff]
    %v90 = vld [vmem:[%s1 + $0x38] sm:$0xff]
    %v91 = vld [vmem:[%s1 + $0x40] sm:$0xff]
    %v92 = vld [vmem:[%s1 + $0x48] sm:$0xff]
    %v93 = vld [vmem:[%s1 + $0x50] sm:$0xff]
    %v94 = vld [vmem:[%s1 + $0x58] sm:$0xff]
    %v95 = vld [vmem:[%s1 + $0x60] sm:$0xff]
    %v96 = vld [vmem:[%s1 + $0x68] sm:$0xff]
    %v97 = vld [vmem:[%s1 + $0x70] sm:$0xff]
    %v98 = vld [vmem:[%s1 + $0x78] sm:$0xff]
    %99 = vmatprep.subr.mxu0 0.0
    %100 = vmatpush1.msra.mxu0 %v83
    %101 = vmatprep.subr.mxu0 0.0
    %102 = vmatpush1.msra.mxu0 %v84
    %103 = vmatprep.subr.mxu0 0.0
    %104 = vmatpush1.msra.mxu0 %v85
    %105 = vmatprep.subr.mxu0 0.0
    %106 = vmatpush1.msra.mxu0 %v86
    %107 = vmatprep.subr.mxu0 0.0
    %108 = vmatpush1.msra.mxu0 %v87
    %109 = vmatprep.subr.mxu0 0.0
    %110 = vmatpush1.msra.mxu0 %v88
    %111 = vmatprep.subr.mxu0 0.0
    %112 = vmatpush1.msra.mxu0 %v89
    %113 = vmatprep.subr.mxu0 0.0
    %114 = vmatpush1.msra.mxu0 %v90
    %115 = vmatprep.subr.mxu0 0.0
    %116 = vmatpush1.msra.mxu0 %v91
    %117 = vmatprep.subr.mxu0 0.0
    %118 = vmatpush1.msra.mxu0 %v92
    %119 = vmatprep.subr.mxu0 0.0
    %120 = vmatpush1.msra.mxu0 %v93
    %121 = vmatprep.subr.mxu0 0.0
    %122 = vmatpush1.msra.mxu0 %v94
    %123 = vmatprep.subr.mxu0 0.0
    %124 = vmatpush1.msra.mxu0 %v95
    %125 = vmatprep.subr.mxu0 0.0
    %126 = vmatpush1.msra.mxu0 %v96
    %127 = vmatprep.subr.mxu0 0.0
    %128 = vmatpush1.msra.mxu0 %v97
    %129 = vmatprep.subr.mxu0 0.0
    %130 = vmatpush1.msra.mxu0 %v98
    %131 = vmatprep.subr.mxu0 0.0
    %132 = vmatpush1.msra.mxu0 0.0
    %133 = vmatprep.subr.mxu0 0.0
    %134 = vmatpush1.msra.mxu0 0.0
    %135 = vmatprep.subr.mxu0 0.0
    %136 = vmatpush1.msra.mxu0 0.0
    %137 = vmatprep.subr.mxu0 0.0
    %138 = vmatpush1.msra.mxu0 0.0
    %139 = vmatprep.subr.mxu0 0.0
    %140 = vmatpush1.msra.mxu0 0.0
    %141 = vmatprep.subr.mxu0 0.0
    %142 = vmatpush1.msra.mxu0 0.0
    %143 = vmatprep.subr.mxu0 0.0
    %144 = vmatpush1.msra.mxu0 0.0
    %145 = vmatprep.subr.mxu0 0.0
    %146 = vmatpush1.msra.mxu0 0.0
    %147 = vmatprep.subr.mxu0 0.0
    %148 = vmatpush1.msra.mxu0 0.0
    %149 = vmatprep.subr.mxu0 0.0
    %150 = vmatpush1.msra.mxu0 0.0
    %151 = vmatprep.subr.mxu0 0.0
    %152 = vmatpush1.msra.mxu0 0.0
    %153 = vmatprep.subr.mxu0 0.0
    %154 = vmatpush1.msra.mxu0 0.0
    %155 = vmatprep.subr.mxu0 0.0
    %156 = vmatpush1.msra.mxu0 0.0
    %157 = vmatprep.subr.mxu0 0.0
    %158 = vmatpush1.msra.mxu0 0.0
    %159 = vmatprep.subr.mxu0 0.0
    %160 = vmatpush1.msra.mxu0 0.0
    %161 = vmatprep.subr.mxu0 0.0
    %162 = vmatpush1.msra.mxu0 0.0
    %163 = vmatprep.mubr.f32.mxu0 0.0
    %164 = vmatmul.mubr.f32.gmra.mrb[0].mxu0 %v67
    %v165 = vpop.f32.mrb[0].mxu0
    %v166 = vadd.f32 0.0, %v165
    %v167 = vpop.f32.mrb[0].mxu0
    %168 = vmatprep.mubr.f32.mxu0 0.0
    %169 = vmatmul.mubr.f32.gmra.mrb[0].mxu0 %v68
    %v170 = vpop.f32.mrb[0].mxu0
    %v171 = vadd.f32 0.0, %v170
    %v172 = vpop.f32.mrb[0].mxu0
    %173 = vmatprep.mubr.f32.mxu0 0.0
    %174 = vmatmul.mubr.f32.gmra.mrb[0].mxu0 %v69
    %v175 = vpop.f32.mrb[0].mxu0
    %v176 = vadd.f32 0.0, %v175
    %v177 = vpop.f32.mrb[0].mxu0
    %178 = vmatprep.mubr.f32.mxu0 0.0
    %179 = vmatmul.mubr.f32.gmra.mrb[0].mxu0 %v70
    %v180 = vpop.f32.mrb[0].mxu0
    %v181 = vadd.f32 0.0, %v180
    %v182 = vpop.f32.mrb[0].mxu0
    %183 = vmatprep.mubr.f32.mxu0 0.0
    %184 = vmatmul.mubr.f32.gmra.mrb[0].mxu0 %v71
    %v185 = vpop.f32.mrb[0].mxu0
    %v186 = vadd.f32 0.0, %v185
    %v187 = vpop.f32.mrb[0].mxu0
    %188 = vmatprep.mubr.f32.mxu0 0.0
    %189 = vmatmul.mubr.f32.gmra.mrb[0].mxu0 %v72
    %v190 = vpop.f32.mrb[0].mxu0
    %v191 = vadd.f32 0.0, %v190
    %v192 = vpop.f32.mrb[0].mxu0
    %193 = vmatprep.mubr.f32.mxu0 0.0
    %194 = vmatmul.mubr.f32.gmra.mrb[0].mxu0 %v73
    %v195 = vpop.f32.mrb[0].mxu0
    %v196 = vadd.f32 0.0, %v195
    %v197 = vpop.f32.mrb[0].mxu0
    %198 = vmatprep.mubr.f32.mxu0 0.0
    %199 = vmatmul.mubr.f32.gmra.mrb[0].mxu0 %v74
    %v200 = vpop.f32.mrb[0].mxu0
    %v201 = vadd.f32 0.0, %v200
    %v202 = vpop.f32.mrb[0].mxu0
    %203 = vmatprep.mubr.f32.mxu0 0.0
    %204 = vmatmul.mubr.f32.gmra.mrb[0].mxu0 %v75
    %v205 = vpop.f32.mrb[0].mxu0
    %v206 = vadd.f32 0.0, %v205
    %v207 = vpop.f32.mrb[0].mxu0
    %208 = vmatprep.mubr.f32.mxu0 0.0
    %209 = vmatmul.mubr.f32.gmra.mrb[0].mxu0 %v76
    %v210 = vpop.f32.mrb[0].mxu0
    %v211 = vadd.f32 0.0, %v210
    %v212 = vpop.f32.mrb[0].mxu0
    %213 = vmatprep.mubr.f32.mxu0 0.0
    %214 = vmatmul.mubr.f32.gmra.mrb[0].mxu0 %v77
    %v215 = vpop.f32.mrb[0].mxu0
    %v216 = vadd.f32 0.0, %v215
    %v217 = vpop.f32.mrb[0].mxu0
    %218 = vmatprep.mubr.f32.mxu0 0.0
    %219 = vmatmul.mubr.f32.gmra.mrb[0].mxu0 %v78
    %v220 = vpop.f32.mrb[0].mxu0
    %v221 = vadd.f32 0.0, %v220
    %v222 = vpop.f32.mrb[0].mxu0
    %223 = vmatprep.mubr.f32.mxu0 0.0
    %224 = vmatmul.mubr.f32.gmra.mrb[0].mxu0 %v79
    %v225 = vpop.f32.mrb[0].mxu0
    %v226 = vadd.f32 0.0, %v225
    %v227 = vpop.f32.mrb[0].mxu0
    %228 = vmatprep.mubr.f32.mxu0 0.0
    %229 = vmatmul.mubr.f32.gmra.mrb[0].mxu0 %v80
    %v230 = vpop.f32.mrb[0].mxu0
    %v231 = vadd.f32 0.0, %v230
    %v232 = vpop.f32.mrb[0].mxu0
    %233 = vmatprep.mubr.f32.mxu0 0.0
    %234 = vmatmul.mubr.f32.gmra.mrb[0].mxu0 %v81
    %v235 = vpop.f32.mrb[0].mxu0
    %v236 = vadd.f32 0.0, %v235
    %v237 = vpop.f32.mrb[0].mxu0
    %238 = vmatprep.mubr.f32.mxu0 0.0
    %239 = vmatmul.mubr.f32.gmra.mrb[0].mxu0 %v82
    %v240 = vpop.f32.mrb[0].mxu0
    %v241 = vadd.f32 0.0, %v240
    %v242 = vpop.f32.mrb[0].mxu0
    %243 = vdwg.mxu0
    %v244 = vadd.f32 %v51, %v166
    %v245 = vadd.f32 %v52, %v171
    %v246 = vadd.f32 %v53, %v176
    %v247 = vadd.f32 %v54, %v181
    %v248 = vadd.f32 %v55, %v186
    %v249 = vadd.f32 %v56, %v191
    %v250 = vadd.f32 %v57, %v196
    %v251 = vadd.f32 %v58, %v201
    %v252 = vadd.f32 %v59, %v206
    %v253 = vadd.f32 %v60, %v211
    %v254 = vadd.f32 %v61, %v216
    %v255 = vadd.f32 %v62, %v221
    %v256 = vadd.f32 %v63, %v226
    %v257 = vadd.f32 %v64, %v231
    %v258 = vadd.f32 %v65, %v236
    %v259 = vadd.f32 %v66, %v241
    %260 = vst [vmem:[#allocation2] sm:$0xff] %v244
    %261 = vst [vmem:[#allocation2 + $0x8] sm:$0xff] %v245
    %262 = vst [vmem:[#allocation2 + $0x10] sm:$0xff] %v246
    %263 = vst [vmem:[#allocation2 + $0x18] sm:$0xff] %v247
    %264 = vst [vmem:[#allocation2 + $0x20] sm:$0xff] %v248
    %265 = vst [vmem:[#allocation2 + $0x28] sm:$0xff] %v249
    %266 = vst [vmem:[#allocation2 + $0x30] sm:$0xff] %v250
    %267 = vst [vmem:[#allocation2 + $0x38] sm:$0xff] %v251
    %268 = vst [vmem:[#allocation2 + $0x40] sm:$0xff] %v252
    %269 = vst [vmem:[#allocation2 + $0x48] sm:$0xff] %v253
    %270 = vst [vmem:[#allocation2 + $0x50] sm:$0xff] %v254
    %271 = vst [vmem:[#allocation2 + $0x58] sm:$0xff] %v255
    %272 = vst [vmem:[#allocation2 + $0x60] sm:$0xff] %v256
    %273 = vst [vmem:[#allocation2 + $0x68] sm:$0xff] %v257
    %274 = vst [vmem:[#allocation2 + $0x70] sm:$0xff] %v258
    %275 = vst [vmem:[#allocation2 + $0x78] sm:$0xff] %v259
    // Predicated region
    $region26: #{sage_feature_propagation.1} parent=1 // pred_check
      %p276 = pneg %p31
    $region27: #{sage_feature_propagation.1} parent=1 // pred_check_branch
      %278 = sbr.rel (%p276) target = $region29
    $region28: #{sage_feature_propagation.1} parent=1 // pred_region
      %v279 = vld [vmem:[#allocation2] sm:$0xff]
      %v280 = vld [vmem:[#allocation2 + $0x8] sm:$0xff]
      %v281 = vld [vmem:[#allocation2 + $0x10] sm:$0xff]
      %v282 = vld [vmem:[#allocation2 + $0x18] sm:$0xff]
      %v283 = vld [vmem:[#allocation2 + $0x20] sm:$0xff]
      %v284 = vld [vmem:[#allocation2 + $0x28] sm:$0xff]
      %v285 = vld [vmem:[#allocation2 + $0x30] sm:$0xff]
      %v286 = vld [vmem:[#allocation2 + $0x38] sm:$0xff]
      %v287 = vld [vmem:[#allocation2 + $0x40] sm:$0xff]
      %v288 = vld [vmem:[#allocation2 + $0x48] sm:$0xff]
      %v289 = vld [vmem:[#allocation2 + $0x50] sm:$0xff]
      %v290 = vld [vmem:[#allocation2 + $0x58] sm:$0xff]
      %v291 = vld [vmem:[#allocation2 + $0x60] sm:$0xff]
      %v292 = vld [vmem:[#allocation2 + $0x68] sm:$0xff]
      %v293 = vld [vmem:[#allocation2 + $0x70] sm:$0xff]
      %v294 = vld [vmem:[#allocation2 + $0x78] sm:$0xff]
      %v295 = vld [vmem:[%s2] sm:$0xff]
      %v296 = vld [vmem:[%s2 + $0x8] sm:$0xff]
      %v297 = vld [vmem:[%s2 + $0x10] sm:$0xff]
      %v298 = vld [vmem:[%s2 + $0x18] sm:$0xff]
      %v299 = vld [vmem:[%s2 + $0x20] sm:$0xff]
      %v300 = vld [vmem:[%s2 + $0x28] sm:$0xff]
      %v301 = vld [vmem:[%s2 + $0x30] sm:$0xff]
      %v302 = vld [vmem:[%s2 + $0x38] sm:$0xff]
      %v303 = vld [vmem:[%s2 + $0x40] sm:$0xff]
      %v304 = vld [vmem:[%s2 + $0x48] sm:$0xff]
      %v305 = vld [vmem:[%s2 + $0x50] sm:$0xff]
      %v306 = vld [vmem:[%s2 + $0x58] sm:$0xff]
      %v307 = vld [vmem:[%s2 + $0x60] sm:$0xff]
      %v308 = vld [vmem:[%s2 + $0x68] sm:$0xff]
      %v309 = vld [vmem:[%s2 + $0x70] sm:$0xff]
      %v310 = vld [vmem:[%s2 + $0x78] sm:$0xff]
      %v311 = vld [vmem:[%s3] sm:$0x1]
      %v313 = vlaneseq
      %v314 = vshrl.u32 %v313, 7
      %v315 = vsub.s32 0, %v314
      %v316 = vrot.slane %v311, %v315
      %318 = vmatprep.subr.mxu0 0.0
      %319 = vmatpush1.msra.mxu0 %v295
      %320 = vmatprep.subr.mxu0 0.0
      %321 = vmatpush1.msra.mxu0 %v296
      %322 = vmatprep.subr.mxu0 0.0
      %323 = vmatpush1.msra.mxu0 %v297
      %324 = vmatprep.subr.mxu0 0.0
      %325 = vmatpush1.msra.mxu0 %v298
      %326 = vmatprep.subr.mxu0 0.0
      %327 = vmatpush1.msra.mxu0 %v299
      %328 = vmatprep.subr.mxu0 0.0
      %329 = vmatpush1.msra.mxu0 %v300
      %330 = vmatprep.subr.mxu0 0.0
      %331 = vmatpush1.msra.mxu0 %v301
      %332 = vmatprep.subr.mxu0 0.0
      %333 = vmatpush1.msra.mxu0 %v302
      %334 = vmatprep.subr.mxu0 0.0
      %335 = vmatpush1.msra.mxu0 %v303
      %336 = vmatprep.subr.mxu0 0.0
      %337 = vmatpush1.msra.mxu0 %v304
      %338 = vmatprep.subr.mxu0 0.0
      %339 = vmatpush1.msra.mxu0 %v305
      %340 = vmatprep.subr.mxu0 0.0
      %341 = vmatpush1.msra.mxu0 %v306
      %342 = vmatprep.subr.mxu0 0.0
      %343 = vmatpush1.msra.mxu0 %v307
      %344 = vmatprep.subr.mxu0 0.0
      %345 = vmatpush1.msra.mxu0 %v308
      %346 = vmatprep.subr.mxu0 0.0
      %347 = vmatpush1.msra.mxu0 %v309
      %348 = vmatprep.subr.mxu0 0.0
      %349 = vmatpush1.msra.mxu0 %v310
      %350 = vmatprep.subr.mxu0 0.0
      %351 = vmatpush1.msra.mxu0 0.0
      %352 = vmatprep.subr.mxu0 0.0
      %353 = vmatpush1.msra.mxu0 0.0
      %354 = vmatprep.subr.mxu0 0.0
      %355 = vmatpush1.msra.mxu0 0.0
      %356 = vmatprep.subr.mxu0 0.0
      %357 = vmatpush1.msra.mxu0 0.0
      %358 = vmatprep.subr.mxu0 0.0
      %359 = vmatpush1.msra.mxu0 0.0
      %360 = vmatprep.subr.mxu0 0.0
      %361 = vmatpush1.msra.mxu0 0.0
      %362 = vmatprep.subr.mxu0 0.0
      %363 = vmatpush1.msra.mxu0 0.0
      %364 = vmatprep.subr.mxu0 0.0
      %365 = vmatpush1.msra.mxu0 0.0
      %366 = vmatprep.subr.mxu0 0.0
      %367 = vmatpush1.msra.mxu0 0.0
      %368 = vmatprep.subr.mxu0 0.0
      %369 = vmatpush1.msra.mxu0 0.0
      %370 = vmatprep.subr.mxu0 0.0
      %371 = vmatpush1.msra.mxu0 0.0
      %372 = vmatprep.subr.mxu0 0.0
      %373 = vmatpush1.msra.mxu0 0.0
      %374 = vmatprep.subr.mxu0 0.0
      %375 = vmatpush1.msra.mxu0 0.0
      %376 = vmatprep.subr.mxu0 0.0
      %377 = vmatpush1.msra.mxu0 0.0
      %378 = vmatprep.subr.mxu0 0.0
      %379 = vmatpush1.msra.mxu0 0.0
      %380 = vmatprep.subr.mxu0 0.0
      %381 = vmatpush1.msra.mxu0 0.0
      %382 = vmatprep.mubr.f32.mxu0 0.0
      %383 = vmatmul.mubr.f32.gmra.mrb[0].mxu0 %v279
      %v384 = vpop.f32.mrb[0].mxu0
      %v385 = vadd.f32 %v316, %v384
      %v386 = vpop.f32.mrb[0].mxu0
      %387 = vmatprep.mubr.f32.mxu0 0.0
      %388 = vmatmul.mubr.f32.gmra.mrb[0].mxu0 %v280
      %v389 = vpop.f32.mrb[0].mxu0
      %v390 = vadd.f32 %v316, %v389
      %v391 = vpop.f32.mrb[0].mxu0
      %392 = vmatprep.mubr.f32.mxu0 0.0
      %393 = vmatmul.mubr.f32.gmra.mrb[0].mxu0 %v281
      %v394 = vpop.f32.mrb[0].mxu0
      %v395 = vadd.f32 %v316, %v394
      %v396 = vpop.f32.mrb[0].mxu0
      %397 = vmatprep.mubr.f32.mxu0 0.0
      %398 = vmatmul.mubr.f32.gmra.mrb[0].mxu0 %v282
      %v399 = vpop.f32.mrb[0].mxu0
      %v400 = vadd.f32 %v316, %v399
      %v401 = vpop.f32.mrb[0].mxu0
      %402 = vmatprep.mubr.f32.mxu0 0.0
      %403 = vmatmul.mubr.f32.gmra.mrb[0].mxu0 %v283
      %v404 = vpop.f32.mrb[0].mxu0
      %v405 = vadd.f32 %v316, %v404
      %v406 = vpop.f32.mrb[0].mxu0
      %407 = vmatprep.mubr.f32.mxu0 0.0
      %408 = vmatmul.mubr.f32.gmra.mrb[0].mxu0 %v284
      %v409 = vpop.f32.mrb[0].mxu0
      %v410 = vadd.f32 %v316, %v409
      %v411 = vpop.f32.mrb[0].mxu0
      %412 = vmatprep.mubr.f32.mxu0 0.0
      %413 = vmatmul.mubr.f32.gmra.mrb[0].mxu0 %v285
      %v414 = vpop.f32.mrb[0].mxu0
      %v415 = vadd.f32 %v316, %v414
      %v416 = vpop.f32.mrb[0].mxu0
      %417 = vmatprep.mubr.f32.mxu0 0.0
      %418 = vmatmul.mubr.f32.gmra.mrb[0].mxu0 %v286
      %v419 = vpop.f32.mrb[0].mxu0
      %v420 = vadd.f32 %v316, %v419
      %v421 = vpop.f32.mrb[0].mxu0
      %422 = vmatprep.mubr.f32.mxu0 0.0
      %423 = vmatmul.mubr.f32.gmra.mrb[0].mxu0 %v287
      %v424 = vpop.f32.mrb[0].mxu0
      %v425 = vadd.f32 %v316, %v424
      %v426 = vpop.f32.mrb[0].mxu0
      %427 = vmatprep.mubr.f32.mxu0 0.0
      %428 = vmatmul.mubr.f32.gmra.mrb[0].mxu0 %v288
      %v429 = vpop.f32.mrb[0].mxu0
      %v430 = vadd.f32 %v316, %v429
      %v431 = vpop.f32.mrb[0].mxu0
      %432 = vmatprep.mubr.f32.mxu0 0.0
      %433 = vmatmul.mubr.f32.gmra.mrb[0].mxu0 %v289
      %v434 = vpop.f32.mrb[0].mxu0
      %v435 = vadd.f32 %v316, %v434
      %v436 = vpop.f32.mrb[0].mxu0
      %437 = vmatprep.mubr.f32.mxu0 0.0
      %438 = vmatmul.mubr.f32.gmra.mrb[0].mxu0 %v290
      %v439 = vpop.f32.mrb[0].mxu0
      %v440 = vadd.f32 %v316, %v439
      %v441 = vpop.f32.mrb[0].mxu0
      %442 = vmatprep.mubr.f32.mxu0 0.0
      %443 = vmatmul.mubr.f32.gmra.mrb[0].mxu0 %v291
      %v444 = vpop.f32.mrb[0].mxu0
      %v445 = vadd.f32 %v316, %v444
      %v446 = vpop.f32.mrb[0].mxu0
      %447 = vmatprep.mubr.f32.mxu0 0.0
      %448 = vmatmul.mubr.f32.gmra.mrb[0].mxu0 %v292
      %v449 = vpop.f32.mrb[0].mxu0
      %v450 = vadd.f32 %v316, %v449
      %v451 = vpop.f32.mrb[0].mxu0
      %452 = vmatprep.mubr.f32.mxu0 0.0
      %453 = vmatmul.mubr.f32.gmra.mrb[0].mxu0 %v293
      %v454 = vpop.f32.mrb[0].mxu0
      %v455 = vadd.f32 %v316, %v454
      %v456 = vpop.f32.mrb[0].mxu0
      %457 = vmatprep.mubr.f32.mxu0 0.0
      %458 = vmatmul.mubr.f32.gmra.mrb[0].mxu0 %v294
      %v459 = vpop.f32.mrb[0].mxu0
      %v460 = vadd.f32 %v316, %v459
      %v461 = vpop.f32.mrb[0].mxu0
      %462 = vdwg.mxu0
      %463 = vst [vmem:[%s4] sm:$0xff] %v385
      %464 = vst [vmem:[%s4 + $0x8] sm:$0xff] %v390
      %465 = vst [vmem:[%s4 + $0x10] sm:$0xff] %v395
      %466 = vst [vmem:[%s4 + $0x18] sm:$0xff] %v400
      %467 = vst [vmem:[%s4 + $0x20] sm:$0xff] %v405
      %468 = vst [vmem:[%s4 + $0x28] sm:$0xff] %v410
      %469 = vst [vmem:[%s4 + $0x30] sm:$0xff] %v415
      %470 = vst [vmem:[%s4 + $0x38] sm:$0xff] %v420
      %471 = vst [vmem:[%s4 + $0x40] sm:$0xff] %v425
      %472 = vst [vmem:[%s4 + $0x48] sm:$0xff] %v430
      %473 = vst [vmem:[%s4 + $0x50] sm:$0xff] %v435
      %474 = vst [vmem:[%s4 + $0x58] sm:$0xff] %v440
      %475 = vst [vmem:[%s4 + $0x60] sm:$0xff] %v445
      %476 = vst [vmem:[%s4 + $0x68] sm:$0xff] %v450
      %477 = vst [vmem:[%s4 + $0x70] sm:$0xff] %v455
      %478 = vst [vmem:[%s4 + $0x78] sm:$0xff] %v460
    $region29: #{sage_feature_propagation.1} parent=1 // pred_fallthru
      _
    // Predicated region
    $region30: #{sage_feature_propagation.1} parent=1 // pred_check
      _
    $region31: #{sage_feature_propagation.1} parent=1 // pred_check_branch
      %480 = sbr.rel (0) target = $region33
    $region32: #{sage_feature_propagation.1} parent=1 // pred_region
      _
    $region33: #{sage_feature_propagation.1} parent=1 // pred_fallthru
      _
    // Predicated region
    $region34: #{sage_feature_propagation.1} parent=1 // pred_check
      _
    $region35: #{sage_feature_propagation.1} parent=1 // pred_check_branch
      %482 = sbr.rel (0) target = $region37
    $region36: #{sage_feature_propagation.1} parent=1 // pred_region
      _
    $region37: #{sage_feature_propagation.1} parent=1 // pred_fallthru
      _
    %483 = vsyncpa [#allocation4], 1

</llo_original>
